<compile_context>
chip_gen: v5e
topology: v5e:2x2
jax: 0.10.0
libtpu: 0.0.40
codegen_flags: <defaults>
</compile_context>

<pallas_src>
import functools
import math

import jax
import jax.numpy as jnp
from jax.experimental import pallas as pl
from jax.experimental.pallas import tpu as pltpu

_LANE = 128


# ----------------------------- Pallas kernel ---------------------------------
def _patch_embed_kernel(x_ref, w_ref, b_ref, o_ref):
    # bf16 operands -> MXU, f32 accumulate; bias add in f32, store in out dtype.
    acc = jnp.dot(x_ref[...], w_ref[...], preferred_element_type=jnp.float32)
    o_ref[...] = (acc + b_ref[...]).astype(o_ref.dtype)


# --------------------------- tiling heuristics --------------------------------
def _round_up(x, m):
    return ((x + m - 1) // m) * m


def _tpu_config():
    """Generation-aware tile cap / VMEM budget.

    v5e, v6e: 1 TensorCore, 128 MiB VMEM -> big tiles, 64 MiB scoped limit.
    v7x:      2 TensorCores, 64 MiB VMEM -> <=1024-row tiles, 40 MiB limit,
              prefer an even grid step count so both cores get equal work.
    Unknown device kinds fall back to the conservative (v7x-safe) settings.
    """
    kind = ""
    try:
        kind = jax.devices()[0].device_kind.lower()
    except Exception:
        pass
    is_v7 = ("v7" in kind) or ("7x" in kind)
    known_single_core = any(tag in kind for tag in ("v5", "v6"))
    if is_v7 or not known_single_core:
        return {"max_tile": 1024, "vmem_limit": 40 * 1024 * 1024, "two_cores": True}
    return {"max_tile": 2048, "vmem_limit": 64 * 1024 * 1024, "two_cores": False}


def _choose_tiling(n_rows, *, max_tile, two_cores):
    """Row tile (multiple of 128) and padded row count (whole number of tiles)."""
    tn = max(_LANE, min(max_tile, _round_up(n_rows, _LANE)))
    steps = pl.cdiv(n_rows, tn)
    if two_cores and steps > 1 and steps % 2 == 1:
        steps += 1  # even step count -> balanced 2-way megacore sharding on v7x
    return tn, steps * tn


# ------------------------------ matmul wrapper --------------------------------
def patch_embed_matmul(patches, w_mat, bias, *, out_dtype=jnp.bfloat16):
    """out = patches @ w_mat + bias in one Pallas kernel.

    patches: (N, K), w_mat: (K, E), bias: (E,).  Returns (N, E) in out_dtype.
    """
    N, K = patches.shape
    E = w_mat.shape[1]
    cfg = _tpu_config()
    tn, n_pad = _choose_tiling(N, max_tile=cfg["max_tile"], two_cores=cfg["two_cores"])

    x_bf = patches.astype(jnp.bfloat16)           # no-op if caller already passed bf16
    if n_pad != N:
        x_bf = jnp.pad(x_bf, ((0, n_pad - N), (0, 0)))
    w_bf = w_mat.astype(jnp.bfloat16)
    b_f32 = bias.reshape(1, E).astype(jnp.float32)

    out_bytes = jnp.dtype(out_dtype).itemsize
    cost = pl.CostEstimate(
        flops=2 * n_pad * K * E,
        transcendentals=0,
        bytes_accessed=(x_bf.size * 2 + w_bf.size * 2 + b_f32.size * 4
                        + n_pad * E * out_bytes),
    )

    out = pl.pallas_call(
        _patch_embed_kernel,
        out_shape=jax.ShapeDtypeStruct((n_pad, E), out_dtype),
        grid=(n_pad // tn,),
        in_specs=[
            # Row tile of patch vectors (double-buffered by the pipeliner).
            pl.BlockSpec((tn, K), lambda i: (i, 0)),
            # Grid-invariant weight / bias: resident, single buffer (no 2nd copy).
            pl.BlockSpec((K, E), lambda i: (0, 0), pipeline_mode=pl.Buffered(1)),
            pl.BlockSpec((1, E), lambda i: (0, 0), pipeline_mode=pl.Buffered(1)),
        ],
        out_specs=pl.BlockSpec((tn, E), lambda i: (i, 0)),
        compiler_params=pltpu.CompilerParams(
            dimension_semantics=("parallel",),
            vmem_limit_bytes=cfg["vmem_limit"],
        ),
        cost_estimate=cost,
    )(x_bf, w_bf, b_f32)

    return out if n_pad == N else out[:N]


# ------------------------------- forward --------------------------------------
def patch_embed_forward(img_nchw, params, *, patch_size,
                        compute_dtype=jnp.bfloat16, out_dtype=jnp.bfloat16):
    """PatchEmbed.forward: (B, C, H, W) -> (B, num_patches, embed_dim)."""
    B, C, H, W = img_nchw.shape
    p = patch_size
    assert H % p == 0 and W % p == 0, (H, W, p)
    h, w = H // p, W // p

    # Cast BEFORE patchify so the materialized patch copy is written once, in
    # bf16.  Feature order (c, ki, kj), kj fastest, matches the torch Conv2d
    # weight layout (E, C, p, p).reshape(E, C*p*p).
    x = img_nchw.astype(compute_dtype)
    x = x.reshape(B, C, h, p, w, p)
    x = jnp.transpose(x, (0, 2, 4, 1, 3, 5)).reshape(B * h * w, C * p * p)

    w_mat = params["proj_w"].reshape(params["proj_w"].shape[0], -1).T  # (C*p*p, E)
    out = patch_embed_matmul(x, w_mat, params["proj_b"], out_dtype=out_dtype)
    return out.reshape(B, h * w, -1)


def patch_embed_reference(img_nchw, params, *, patch_size):
    """Pure-JAX f32 reference of the PyTorch module (for validation)."""
    out = jax.lax.conv_general_dilated(
        img_nchw, params["proj_w"],
        window_strides=(patch_size, patch_size),
        padding="VALID",
        dimension_numbers=("NCHW", "OIHW", "NCHW"),
    )
    out = out + params["proj_b"][None, :, None, None]
    B, E, h, w = out.shape
    return out.reshape(B, E, h * w).transpose(0, 2, 1)


# --------------------------------- main ----------------------------------------
if __name__ == "__main__":
    key = jax.random.PRNGKey(0)
    k_img, k_w, k_b = jax.random.split(key, 3)

    # Small shapes consistent with the module: img 32x32, patch 4 -> 8x8 = 64
    # tokens per image; embed_dim = 128 keeps the output lane-dense.
    B, C, IMG, P, E = 2, 3, 32, 4, 128
    fan_in = C * P * P

    img = jax.random.normal(k_img, (B, C, IMG, IMG), jnp.float32)
    params = {
        "proj_w": jax.random.normal(k_w, (E, C, P, P), jnp.float32) / math.sqrt(fan_in),
        "proj_b": 0.1 * jax.random.normal(k_b, (E,), jnp.float32),
    }

    fwd = jax.jit(functools.partial(patch_embed_forward, patch_size=P))
    out = jax.block_until_ready(fwd(img, params))

    num_patches = (IMG // P) * (IMG // P)
    assert out.shape == (B, num_patches, E), out.shape
    assert out.dtype == jnp.bfloat16, out.dtype
    assert bool(jnp.all(jnp.isfinite(out.astype(jnp.float32))))

    # Validate against the f32 reference; tolerance accounts for the deliberate
    # bf16 operand/output precision (accumulation is still f32 in-kernel).
    ref = patch_embed_reference(img, params, patch_size=P)
    max_err = float(jnp.max(jnp.abs(out.astype(jnp.float32) - ref)))
    assert max_err < 1.5e-1, f"max abs err vs f32 reference too large: {max_err}"

    print("KERNEL_OK")
</pallas_src>

<mosaic_0001>
module attributes {stable_mosaic.version = 11 : i64} {
  func.func @_patch_embed_kernel(%arg0: i32, %arg1: memref<128x48xbf16, #tpu.memory_space<vmem>>, %arg2: memref<48x128xbf16, #tpu.memory_space<vmem>>, %arg3: memref<1x128xf32, #tpu.memory_space<vmem>>, %arg4: memref<128x128xbf16, #tpu.memory_space<vmem>>) attributes {dimension_semantics = [#tpu.dimension_semantics<parallel>], iteration_bounds = array<i64: 1>, scalar_prefetch = 0 : i64, scratch_operands = 0 : i64, tpu.core_type = #tpu.core_type<tc>, window_params = [{transform_indices = @transform_0, window_bounds = array<i64: 128, 48>}, {pipeline_mode = #tpu.pipeline_mode<synchronous>, transform_indices = @transform_1, window_bounds = array<i64: 48, 128>}, {pipeline_mode = #tpu.pipeline_mode<synchronous>, transform_indices = @transform_2, window_bounds = array<i64: 1, 128>}, {transform_indices = @transform_3, window_bounds = array<i64: 128, 128>}]} {
    %c0 = arith.constant 0 : index
    %c0_0 = arith.constant 0 : index
    %0 = vector.load %arg1[%c0, %c0_0] : memref<128x48xbf16, #tpu.memory_space<vmem>>, vector<128x48xbf16>
    %c0_1 = arith.constant 0 : index
    %c0_2 = arith.constant 0 : index
    %1 = vector.load %arg2[%c0_1, %c0_2] : memref<48x128xbf16, #tpu.memory_space<vmem>>, vector<48x128xbf16>
    %cst = arith.constant dense<0.000000e+00> : vector<128x128xf32>
    %2 = tpu.matmul %0, %1, %cst {dimension_numbers = #tpu.dot_dimension_numbers<[1], [0], [0], [1], [0, 0, 1, 1], [], []>} : vector<128x48xbf16>, vector<48x128xbf16>, vector<128x128xf32> -> vector<128x128xf32>
    %c0_3 = arith.constant 0 : index
    %c0_4 = arith.constant 0 : index
    %3 = vector.load %arg3[%c0_3, %c0_4] : memref<1x128xf32, #tpu.memory_space<vmem>>, vector<1x128xf32>
    %4 = vector.broadcast %3 : vector<1x128xf32> to vector<128x128xf32>
    %5 = arith.addf %2, %4 : vector<128x128xf32>
    %6 = arith.truncf %5 : vector<128x128xf32> to vector<128x128xbf16>
    %c0_5 = arith.constant 0 : index
    %c0_6 = arith.constant 0 : index
    %7 = vector.load %arg4[%c0_5, %c0_6] : memref<128x128xbf16, #tpu.memory_space<vmem>>, vector<128x128xbf16>
    tpu.vector_store %arg4[%c0_5, %c0_6], %6 {strides = array<i32>} : memref<128x128xbf16, #tpu.memory_space<vmem>>, vector<128x128xbf16>,
    return
  }
  func.func @transform_0(%arg0: i32) -> (i32, i32) {
    %c0_i32 = arith.constant 0 : i32
    %c0_i32_0 = arith.constant 0 : i32
    return %arg0, %c0_i32 : i32, i32
  }
  func.func @transform_1(%arg0: i32) -> (i32, i32) {
    %c0_i32 = arith.constant 0 : i32
    %c0_i32_0 = arith.constant 0 : i32
    %c0_i32_1 = arith.constant 0 : i32
    return %c0_i32, %c0_i32_0 : i32, i32
  }
  func.func @transform_2(%arg0: i32) -> (i32, i32) {
    %c0_i32 = arith.constant 0 : i32
    %c0_i32_0 = arith.constant 0 : i32
    %c0_i32_1 = arith.constant 0 : i32
    return %c0_i32, %c0_i32_0 : i32, i32
  }
  func.func @transform_3(%arg0: i32) -> (i32, i32) {
    %c0_i32 = arith.constant 0 : i32
    %c0_i32_0 = arith.constant 0 : i32
    return %arg0, %c0_i32 : i32, i32
  }
}

</mosaic_0001>

<llo_original>
// kernel: patch_embed_forward.1
$region0: #{patch_embed_forward.1}
  #allocation0 [shape = 'u32[]', space=smem, size = 0x4, offset = 0x4, fixed_abs, tag = 'smem constant byte address 0x4 - core index']
  #allocation1 [shape = 'u32[72,128]{1,0:T(1,128)}', space=vmem, size = 0x9000, scoped, tag = 'internal scratch']
  %s0 = inlined_call_operand.vmem [shape: bf16[128,48], index: 0, kind: input, shape index: {}]
  %s1 = inlined_call_operand.vmem [shape: bf16[48,128], index: 1, kind: input, shape index: {}]
  %s2 = inlined_call_operand.vmem [shape: f32[1,128], index: 2, kind: input, shape index: {}]
  %s3 = inlined_call_operand.hbm [shape: bf16[128,128], index: 3, kind: output, shape index: {}]
  %s4 = sld [smem:[#allocation0]]
  $region22: #{patch_embed_forward.1} parent=0
    _
  %s6 = ssub.s32 1, %s4
  %s7 = scalar_select 0, %s6, %s4
  $region1: #{patch_embed_forward.1} parent=0
    #allocation2 [shape = 'u8[32768]{0}', space=vmem, size = 0x8000, scoped, tag = 'output window, operand 0, single buffered']
    #allocation3 [shape = 's32[1]{0}', space=sflag, size = 0x4, scoped, tag = 'scoped memory for patch_embed_forward.1']
    %8 = vsyncpa [#allocation3], 0
    // Predicated region
    $region2: #{patch_embed_forward.1} parent=1 // pred_check
      _
    $region3: #{patch_embed_forward.1} parent=1 // pred_check_branch
      %10 = sbr.rel (0) target = $region5
    $region4: #{patch_embed_forward.1} parent=1 // pred_region
      _
    $region5: #{patch_embed_forward.1} parent=1 // pred_fallthru
      _
    // Predicated region
    $region6: #{patch_embed_forward.1} parent=1 // pred_check
      _
    $region7: #{patch_embed_forward.1} parent=1 // pred_check_branch
      %12 = sbr.rel (0) target = $region9
    $region8: #{patch_embed_forward.1} parent=1 // pred_region
      _
    $region9: #{patch_embed_forward.1} parent=1 // pred_fallthru
      _
    // Predicated region
    $region10: #{patch_embed_forward.1} parent=1 // pred_check
      _
    $region11: #{patch_embed_forward.1} parent=1 // pred_check_branch
      %14 = sbr.rel (0) target = $region13
    $region12: #{patch_embed_forward.1} parent=1 // pred_region
      _
    $region13: #{patch_embed_forward.1} parent=1 // pred_fallthru
      _
    %v16 = vld [vmem:[%s0] sm:$0xf]
    %v17 = vld [vmem:[%s0 + $0x4] sm:$0xf]
    %v18 = vld [vmem:[%s0 + $0x8] sm:$0xf]
    %v19 = vld [vmem:[%s0 + $0xc] sm:$0xf]
    %v20 = vld [vmem:[%s0 + $0x10] sm:$0xf]
    %v21 = vld [vmem:[%s0 + $0x14] sm:$0xf]
    %v22 = vld [vmem:[%s0 + $0x18] sm:$0xf]
    %v23 = vld [vmem:[%s0 + $0x1c] sm:$0xf]
    %v24 = vld [vmem:[%s0 + $0x20] sm:$0xf]
    %v25 = vld [vmem:[%s0 + $0x24] sm:$0xf]
    %v26 = vld [vmem:[%s0 + $0x28] sm:$0xf]
    %v27 = vld [vmem:[%s0 + $0x2c] sm:$0xf]
    %v28 = vld [vmem:[%s0 + $0x30] sm:$0xf]
    %v29 = vld [vmem:[%s0 + $0x34] sm:$0xf]
    %v30 = vld [vmem:[%s0 + $0x38] sm:$0xf]
    %v31 = vld [vmem:[%s0 + $0x3c] sm:$0xf]
    %v32 = vld [vmem:[%s1] sm:$0xf]
    %v33 = vld [vmem:[%s1 + $0x4] sm:$0xf]
    %v34 = vld [vmem:[%s1 + $0x8] sm:$0xf]
    %v35 = vld [vmem:[%s1 + $0xc] sm:$0xf]
    %v36 = vld [vmem:[%s1 + $0x10] sm:$0xf]
    %v37 = vld [vmem:[%s1 + $0x14] sm:$0xf]
    %v38 = vld [vmem:[%s2] sm:$0x1]
    %v40 = vperm.slane %v38, 0
    %v58 = vunpack.c.l.b16 %v16
    %v59 = vunpack.c.l.b16 %v17
    %v60 = vunpack.c.l.b16 %v18
    %v61 = vunpack.c.l.b16 %v19
    %v62 = vunpack.c.l.b16 %v20
    %v63 = vunpack.c.l.b16 %v21
    %v64 = vunpack.c.l.b16 %v22
    %v65 = vunpack.c.l.b16 %v23
    %v66 = vunpack.c.l.b16 %v24
    %v67 = vunpack.c.l.b16 %v25
    %v68 = vunpack.c.l.b16 %v26
    %v69 = vunpack.c.l.b16 %v27
    %v70 = vunpack.c.l.b16 %v28
    %v71 = vunpack.c.l.b16 %v29
    %v72 = vunpack.c.l.b16 %v30
    %v73 = vunpack.c.l.b16 %v31
    %v74 = vpack.c.b16 %v59, %v58
    %v75 = vpack.c.b16 %v61, %v60
    %v76 = vpack.c.b16 %v63, %v62
    %v77 = vpack.c.b16 %v65, %v64
    %v78 = vpack.c.b16 %v67, %v66
    %v79 = vpack.c.b16 %v69, %v68
    %v80 = vpack.c.b16 %v71, %v70
    %v81 = vpack.c.b16 %v73, %v72
    %v88 = vunpack.c.l.b16 %v32
    %v89 = vunpack.c.l.b16 %v33
    %v90 = vunpack.c.l.b16 %v34
    %v91 = vunpack.c.l.b16 %v35
    %v92 = vunpack.c.l.b16 %v36
    %v93 = vunpack.c.l.b16 %v37
    %v94 = vpack.c.b16 %v89, %v88
    %v95 = vpack.c.b16 %v91, %v90
    %v96 = vpack.c.b16 %v93, %v92
    %vm100 = vcmask 392192
    %v102 = vsel %vm100, %v74, 0
    %v105 = vsel %vm100, %v75, 0
    %v108 = vsel %vm100, %v76, 0
    %v111 = vsel %vm100, %v77, 0
    %v114 = vsel %vm100, %v78, 0
    %v117 = vsel %vm100, %v79, 0
    %v120 = vsel %vm100, %v80, 0
    %v123 = vsel %vm100, %v81, 0
    %125 = vmatpush.bf16.msra.mxu0 0
    %126 = vmatpush.bf16.msra.mxu0 0
    %127 = vmatpush.bf16.msra.mxu0 0
    %128 = vmatpush.bf16.msra.mxu0 0
    %129 = vmatpush.bf16.msra.mxu0 0
    %130 = vmatpush.bf16.msra.mxu0 %v96
    %131 = vmatpush.bf16.msra.mxu0 %v95
    %132 = vmatpush.bf16.msra.mxu0 %v94
    %133 = vmatmul.bf16.gmra.mxu0 %v102
    %v134 = vpop.f32.mrf.mxu0
    %v135 = vadd.f32 %v40, %v134
    %v136 = vpop.f32.mrf.mxu0
    %v137 = vadd.f32 %v40, %v136
    %138 = vmatmul.bf16.gmra.mxu0 %v105
    %v139 = vpop.f32.mrf.mxu0
    %v140 = vadd.f32 %v40, %v139
    %v141 = vpop.f32.mrf.mxu0
    %v142 = vadd.f32 %v40, %v141
    %143 = vmatmul.bf16.gmra.mxu0 %v108
    %v144 = vpop.f32.mrf.mxu0
    %v145 = vadd.f32 %v40, %v144
    %v146 = vpop.f32.mrf.mxu0
    %v147 = vadd.f32 %v40, %v146
    %148 = vmatmul.bf16.gmra.mxu0 %v111
    %v149 = vpop.f32.mrf.mxu0
    %v150 = vadd.f32 %v40, %v149
    %v151 = vpop.f32.mrf.mxu0
    %v152 = vadd.f32 %v40, %v151
    %153 = vmatmul.bf16.gmra.mxu0 %v114
    %v154 = vpop.f32.mrf.mxu0
    %v155 = vadd.f32 %v40, %v154
    %v156 = vpop.f32.mrf.mxu0
    %v157 = vadd.f32 %v40, %v156
    %158 = vmatmul.bf16.gmra.mxu0 %v117
    %v159 = vpop.f32.mrf.mxu0
    %v160 = vadd.f32 %v40, %v159
    %v161 = vpop.f32.mrf.mxu0
    %v162 = vadd.f32 %v40, %v161
    %163 = vmatmul.bf16.gmra.mxu0 %v120
    %v164 = vpop.f32.mrf.mxu0
    %v165 = vadd.f32 %v40, %v164
    %v166 = vpop.f32.mrf.mxu0
    %v167 = vadd.f32 %v40, %v166
    %168 = vmatmul.bf16.gmra.mxu0 %v123
    %v169 = vpop.f32.mrf.mxu0
    %v170 = vadd.f32 %v40, %v169
    %v171 = vpop.f32.mrf.mxu0
    %v172 = vadd.f32 %v40, %v171
    %173 = vdwg.mxu0
    %v174 = vpack.c.bf16 %v135, %v135
    %v175 = vpack.c.bf16 %v137, %v137
    %v176 = vpack.c.bf16 %v140, %v140
    %v177 = vpack.c.bf16 %v142, %v142
    %v178 = vpack.c.bf16 %v145, %v145
    %v179 = vpack.c.bf16 %v147, %v147
    %v180 = vpack.c.bf16 %v150, %v150
    %v181 = vpack.c.bf16 %v152, %v152
    %v182 = vpack.c.bf16 %v155, %v155
    %v183 = vpack.c.bf16 %v157, %v157
    %v184 = vpack.c.bf16 %v160, %v160
    %v185 = vpack.c.bf16 %v162, %v162
    %v186 = vpack.c.bf16 %v165, %v165
    %v187 = vpack.c.bf16 %v167, %v167
    %v188 = vpack.c.bf16 %v170, %v170
    %v189 = vpack.c.bf16 %v172, %v172
    %190 = vst [vmem:[#allocation2] sm:$0xf] %v174
    %191 = vst [vmem:[#allocation2 + $0x4] sm:$0xf] %v175
    %192 = vst [vmem:[#allocation2 + $0x8] sm:$0xf] %v176
    %193 = vst [vmem:[#allocation2 + $0xc] sm:$0xf] %v177
    %194 = vst [vmem:[#allocation2 + $0x10] sm:$0xf] %v178
    %195 = vst [vmem:[#allocation2 + $0x14] sm:$0xf] %v179
    %196 = vst [vmem:[#allocation2 + $0x18] sm:$0xf] %v180
    %197 = vst [vmem:[#allocation2 + $0x1c] sm:$0xf] %v181
    %198 = vst [vmem:[#allocation2 + $0x20] sm:$0xf] %v182
    %199 = vst [vmem:[#allocation2 + $0x24] sm:$0xf] %v183
    %200 = vst [vmem:[#allocation2 + $0x28] sm:$0xf] %v184
    %201 = vst [vmem:[#allocation2 + $0x2c] sm:$0xf] %v185
    %202 = vst [vmem:[#allocation2 + $0x30] sm:$0xf] %v186
    %203 = vst [vmem:[#allocation2 + $0x34] sm:$0xf] %v187
    %204 = vst [vmem:[#allocation2 + $0x38] sm:$0xf] %v188
    %205 = vst [vmem:[#allocation2 + $0x3c] sm:$0xf] %v189
    // Predicated region
    $region14: #{patch_embed_forward.1} parent=1 // pred_check
      _
    $region15: #{patch_embed_forward.1} parent=1 // pred_check_branch
      %207 = sbr.rel (0) target = $region17
    $region16: #{patch_embed_forward.1} parent=1 // pred_region
      %209 = vsyncadd [#allocation3], 0
      %s210 = sshll.u32 [#allocation2], 4
      %s211 = int_to_ptr.vmem [resolvable:$true] %s210
      %s212 = sshll.u32 %s3, 4
      %s213 = int_to_ptr.hbm [resolvable:$true] %s212
      %218 = dma.vmem_to_hbm [thread:$0]  %s211, 1024, %s213, [#allocation3], 64, 64, 4
    $region17: #{patch_embed_forward.1} parent=1 // pred_fallthru
      _
    // Predicated region
    $region18: #{patch_embed_forward.1} parent=1 // pred_check
      _
    $region19: #{patch_embed_forward.1} parent=1 // pred_check_branch
      %220 = sbr.rel (0) target = $region21
    $region20: #{patch_embed_forward.1} parent=1 // pred_region
      %222 = dma.done [#allocation3], 1024
    $region21: #{patch_embed_forward.1} parent=1 // pred_fallthru
      _
    %223 = vsyncpa [#allocation3], 1

</llo_original>
